<compile_context>
chip_gen: v6e
topology: v6e:2x2x1
jax: 0.10.0
libtpu: 0.0.40
codegen_flags: <defaults>
</compile_context>

<pallas_src>
import jax
import jax.numpy as jnp
from jax.experimental import pallas as pl
from jax.experimental.pallas import tpu as pltpu

# ----------------------------- model dims ----------------------------------
BATCH = 8
INPUT_DIM = 32                 # reconstruction target dim
COND_DIM = 2                   # forward() hardcodes x[:, -2:]
H_DIM = 32
Z_DIM = 8
X_DIM = INPUT_DIM + COND_DIM   # 34 = feature dim of x fed to h_encoder

# ------------------------- packed-slab layouts -------------------------------
# MXU weight slab: [72, 128] bf16 (resident, fetched once).
_WH_ROW = 0                    # rows 0:34,  cols 0:32   encoder weight (x -> h)
_W2_ROW = 40                   # rows 40:72, cols 0:128  fused stage-2 weight
_W_ROWS = 72
_SLAB_COLS = 128

# Epilogue slab: [8, 128] f32 (biases + decoder-condition rows, f32 VPU math).
_BH_ROW = 0                    # row 0, cols 0:32   encoder bias
_B2_ROW = 1                    # row 1, cols 0:128  fused stage-2 bias
_WDC0_ROW = 2                  # row 2, cols 0:32   decoder cond row 0
_WDC1_ROW = 3                  # row 3, cols 0:32   decoder cond row 1
_E_ROWS = 8

# Output slab column layout ([B, 128]).
_DEC_LO, _DEC_HI = 0, INPUT_DIM                  # 0:32  decoded
_MU_LO, _MU_HI = INPUT_DIM, INPUT_DIM + Z_DIM    # 32:40 mu
_LS_LO, _LS_HI = _MU_HI, _MU_HI + Z_DIM          # 40:48 logstd

_HP = jax.lax.Precision.HIGHEST


def _round_up(a, m):
    return -(-a // m) * m


# ----------------------------- Pallas kernel --------------------------------
def cvae_kernel(x_ref, w_ref, e_ref, out_ref):
    x = x_ref[...]                                   # [Bt, 34] f32
    xb = x.astype(jnp.bfloat16)                      # bf16 MXU operand
    # condition = x[:, -2:], kept f32 for the VPU epilogue FMAs
    cond0 = x[:, X_DIM - 2:X_DIM - 1]                # [Bt, 1]
    cond1 = x[:, X_DIM - 1:X_DIM]                    # [Bt, 1]

    # stage 1: h = relu(x @ Wh + bh)   (bf16 x bf16 -> f32 acc, single MXU pass)
    wh = w_ref[_WH_ROW:_WH_ROW + X_DIM, 0:H_DIM]     # [34, 32] bf16
    bh = e_ref[_BH_ROW:_BH_ROW + 1, 0:H_DIM]         # [1, 32]  f32
    h = jnp.dot(xb, wh, preferred_element_type=jnp.float32) + bh
    h = jnp.maximum(h, 0.0)                          # ReLU on VPU (f32)

    # stage 2 (fused mu/logstd heads + folded decoder z-path):
    # one [Bt,32] x [32,128] matmul -> columns [dec | mu | logstd | 0]
    w2 = w_ref[_W2_ROW:_W2_ROW + H_DIM, :]           # [32, 128] bf16
    b2 = e_ref[_B2_ROW:_B2_ROW + 1, :]               # [1, 128]  f32
    wdc0 = e_ref[_WDC0_ROW:_WDC0_ROW + 1, :]         # [1, 128]  f32 (zero past col 32)
    wdc1 = e_ref[_WDC1_ROW:_WDC1_ROW + 1, :]         # [1, 128]  f32 (zero past col 32)

    out = jnp.dot(h.astype(jnp.bfloat16), w2,
                  preferred_element_type=jnp.float32)
    # decoder condition contribution as VPU broadcast FMAs (only cols 0:32 live)
    out = out + b2 + cond0 * wdc0 + cond1 * wdc1     # [Bt, 128] f32

    out_ref[...] = out.astype(out_ref.dtype)         # single lane-dense store


# ----------------------------- packing (one-time) ----------------------------
def pack_cvae_params(params):
    """Fold / pack PyTorch-layout weights into the two resident slabs.

    Runs ONCE at model-load time (not on the per-call path)."""
    wh, bh, wmu, bmu, wls, bls, wd, bd = params
    wh_t = wh.T                                      # [34, 32]
    wmu_t = wmu.T                                    # [32, 8]
    wls_t = wls.T                                    # [32, 8]
    wd_t = wd.T                                      # [10, 32]
    wdz = wd_t[:Z_DIM, :]                            # [8, 32]  decoder z rows
    wdc = wd_t[Z_DIM:, :]                            # [2, 32]  decoder cond rows

    # z = mu in eval mode => fold the decoder z-path through the mu head.
    # (HIGHEST precision is fine here: one-time cost.)
    w_fold = jnp.dot(wmu_t, wdz, precision=_HP)      # [32, 32]
    b_fold = jnp.dot(bmu, wdz, precision=_HP) + bd   # [32]

    w_slab = jnp.zeros((_W_ROWS, _SLAB_COLS), jnp.float32)
    w_slab = w_slab.at[_WH_ROW:_WH_ROW + X_DIM, 0:H_DIM].set(wh_t)
    w_slab = w_slab.at[_W2_ROW:_W2_ROW + H_DIM, _DEC_LO:_DEC_HI].set(w_fold)
    w_slab = w_slab.at[_W2_ROW:_W2_ROW + H_DIM, _MU_LO:_MU_HI].set(wmu_t)
    w_slab = w_slab.at[_W2_ROW:_W2_ROW + H_DIM, _LS_LO:_LS_HI].set(wls_t)
    w_slab = w_slab.astype(jnp.bfloat16)             # bf16 MXU operands

    e_slab = jnp.zeros((_E_ROWS, _SLAB_COLS), jnp.float32)
    e_slab = e_slab.at[_BH_ROW, 0:H_DIM].set(bh)
    e_slab = e_slab.at[_B2_ROW, _DEC_LO:_DEC_HI].set(b_fold)
    e_slab = e_slab.at[_B2_ROW, _MU_LO:_MU_HI].set(bmu)
    e_slab = e_slab.at[_B2_ROW, _LS_LO:_LS_HI].set(bls)
    e_slab = e_slab.at[_WDC0_ROW, _DEC_LO:_DEC_HI].set(wdc[0])
    e_slab = e_slab.at[_WDC1_ROW, _DEC_LO:_DEC_HI].set(wdc[1])
    return w_slab, e_slab


# ----------------------------- wrapper ---------------------------------------
def cvae_forward(x, w_slab, e_slab, *, block_b=512, out_dtype=jnp.float32):
    """CVAE forward on pre-packed slabs. Returns (decoded, mu, logstd)."""
    B = x.shape[0]
    # pad batch to a multiple of 8 (sublanes)
    b8 = max(8, _round_up(B, 8))
    bt = min(block_b, b8)
    if 16 <= b8 <= block_b:
        # would otherwise be a single grid step; split in two so the "parallel"
        # batch axis can shard across v7x's 2 TensorCores (harmless on v5e/v6e)
        bt = max(8, _round_up(-(-b8 // 2), 8))
    b_pad = _round_up(b8, bt)
    if b_pad != B:
        x = jnp.pad(x, ((0, b_pad - B), (0, 0)))
    grid = (b_pad // bt,)

    out = pl.pallas_call(
        cvae_kernel,
        out_shape=jax.ShapeDtypeStruct((b_pad, _SLAB_COLS), out_dtype),
        grid_spec=pltpu.PrefetchScalarGridSpec(
            num_scalar_prefetch=0,
            grid=grid,
            in_specs=[
                pl.BlockSpec((bt, X_DIM), lambda i: (i, 0)),               # x tile
                pl.BlockSpec((_W_ROWS, _SLAB_COLS), lambda i: (0, 0)),     # bf16 weights (resident)
                pl.BlockSpec((_E_ROWS, _SLAB_COLS), lambda i: (0, 0)),     # f32 epilogue (resident)
            ],
            out_specs=pl.BlockSpec((bt, _SLAB_COLS), lambda i: (i, 0)),
        ),
        compiler_params=pltpu.CompilerParams(
            dimension_semantics=("parallel",)),  # batch axis shards across TCs
    )(x, w_slab, e_slab)

    dec = out[:B, _DEC_LO:_DEC_HI]
    mu = out[:B, _MU_LO:_MU_HI]
    logstd = out[:B, _LS_LO:_LS_HI]
    return dec, mu, logstd


def make_cvae_forward(params, *, block_b=512, out_dtype=jnp.float32):
    """Pack weights once; return a jitted forward(x) -> (decoded, mu, logstd)."""
    w_slab, e_slab = pack_cvae_params(params)
    w_slab = jax.device_put(w_slab)
    e_slab = jax.device_put(e_slab)

    @jax.jit
    def forward(x):
        return cvae_forward(x, w_slab, e_slab,
                            block_b=block_b, out_dtype=out_dtype)

    return forward


# ----------------------------- reference ------------------------------------
def cvae_reference(x, params):
    wh, bh, wmu, bmu, wls, bls, wd, bd = params
    cond = x[:, -COND_DIM:]
    h = jnp.maximum(jnp.dot(x, wh.T, precision=_HP) + bh, 0.0)
    mu = jnp.dot(h, wmu.T, precision=_HP) + bmu
    logstd = jnp.dot(h, wls.T, precision=_HP) + bls
    z = mu  # eval-mode reparametrization
    dec = jnp.dot(jnp.concatenate([z, cond], axis=1), wd.T, precision=_HP) + bd
    return dec, mu, logstd


# ----------------------------- param init -----------------------------------
def init_linear(key, out_dim, in_dim):
    """Deterministic PyTorch-style init: U(-1/sqrt(in), 1/sqrt(in))."""
    kw, kb = jax.random.split(key)
    bound = 1.0 / jnp.sqrt(in_dim)
    w = jax.random.uniform(kw, (out_dim, in_dim), jnp.float32, -bound, bound)
    b = jax.random.uniform(kb, (out_dim,), jnp.float32, -bound, bound)
    return w, b


if __name__ == "__main__":
    root = jax.random.PRNGKey(0)
    k_x, k_h, k_mu, k_ls, k_d = jax.random.split(root, 5)

    wh, bh = init_linear(k_h, H_DIM, X_DIM)
    wmu, bmu = init_linear(k_mu, Z_DIM, H_DIM)
    wls, bls = init_linear(k_ls, Z_DIM, H_DIM)
    wd, bd = init_linear(k_d, INPUT_DIM, Z_DIM + COND_DIM)
    params = (wh, bh, wmu, bmu, wls, bls, wd, bd)

    x = jax.random.normal(k_x, (BATCH, X_DIM), jnp.float32)

    forward = make_cvae_forward(params)        # packs slabs exactly once
    dec, mu, logstd = forward(x)
    jax.block_until_ready((dec, mu, logstd))

    dec_ref, mu_ref, ls_ref = cvae_reference(x, params)
    # bf16 MXU operands + folded z-path => relaxed tolerance vs f32-HIGHEST ref
    assert jnp.allclose(dec, dec_ref, atol=3e-2, rtol=3e-2)
    assert jnp.allclose(mu, mu_ref, atol=3e-2, rtol=3e-2)
    assert jnp.allclose(logstd, ls_ref, atol=3e-2, rtol=3e-2)

    print("KERNEL_OK")
</pallas_src>

<mosaic_0001>
module attributes {stable_mosaic.version = 11 : i64} {
  func.func @cvae_kernel(%arg0: i32, %arg1: memref<8x34xf32, #tpu.memory_space<vmem>>, %arg2: memref<72x128xbf16, #tpu.memory_space<vmem>>, %arg3: memref<8x128xf32, #tpu.memory_space<vmem>>, %arg4: memref<8x128xf32, #tpu.memory_space<vmem>>) attributes {dimension_semantics = [#tpu.dimension_semantics<parallel>], iteration_bounds = array<i64: 1>, scalar_prefetch = 0 : i64, scratch_operands = 0 : i64, tpu.core_type = #tpu.core_type<tc>, window_params = [{transform_indices = @transform_0, window_bounds = array<i64: 8, 34>}, {pipeline_mode = #tpu.pipeline_mode<synchronous>, transform_indices = @transform_1, window_bounds = array<i64: 72, 128>}, {pipeline_mode = #tpu.pipeline_mode<synchronous>, transform_indices = @transform_2, window_bounds = array<i64: 8, 128>}, {transform_indices = @transform_3, window_bounds = array<i64: 8, 128>}]} {
    %c0 = arith.constant 0 : index
    %c0_0 = arith.constant 0 : index
    %0 = vector.load %arg1[%c0, %c0_0] : memref<8x34xf32, #tpu.memory_space<vmem>>, vector<8x34xf32>
    %1 = arith.truncf %0 : vector<8x34xf32> to vector<8x34xbf16>
    %2 = vector.extract_strided_slice %0 {offsets = [0, 32], sizes = [8, 1], strides = [1, 1]} : vector<8x34xf32> to vector<8x1xf32>
    %3 = vector.extract_strided_slice %0 {offsets = [0, 33], sizes = [8, 1], strides = [1, 1]} : vector<8x34xf32> to vector<8x1xf32>
    %c0_1 = arith.constant 0 : index
    %c0_2 = arith.constant 0 : index
    %4 = vector.load %arg2[%c0_1, %c0_2] : memref<72x128xbf16, #tpu.memory_space<vmem>>, vector<34x32xbf16>
    %c0_3 = arith.constant 0 : index
    %c0_4 = arith.constant 0 : index
    %5 = vector.load %arg3[%c0_3, %c0_4] : memref<8x128xf32, #tpu.memory_space<vmem>>, vector<1x32xf32>
    %cst = arith.constant dense<0.000000e+00> : vector<8x32xf32>
    %6 = tpu.matmul %1, %4, %cst {dimension_numbers = #tpu.dot_dimension_numbers<[1], [0], [0], [1], [0, 0, 1, 1], [], []>} : vector<8x34xbf16>, vector<34x32xbf16>, vector<8x32xf32> -> vector<8x32xf32>
    %7 = vector.broadcast %5 : vector<1x32xf32> to vector<8x32xf32>
    %8 = arith.addf %6, %7 : vector<8x32xf32>
    %cst_5 = arith.constant 0.000000e+00 : f32
    %9 = vector.broadcast %cst_5 : f32 to vector<8x32xf32>
    %10 = arith.maximumf %8, %9 : vector<8x32xf32>
    %c40 = arith.constant 40 : index
    %c0_6 = arith.constant 0 : index
    %11 = vector.load %arg2[%c40, %c0_6] : memref<72x128xbf16, #tpu.memory_space<vmem>>, vector<32x128xbf16>
    %c1 = arith.constant 1 : index
    %c0_7 = arith.constant 0 : index
    %12 = vector.load %arg3[%c1, %c0_7] : memref<8x128xf32, #tpu.memory_space<vmem>>, vector<1x128xf32>
    %c2 = arith.constant 2 : index
    %c0_8 = arith.constant 0 : index
    %13 = vector.load %arg3[%c2, %c0_8] : memref<8x128xf32, #tpu.memory_space<vmem>>, vector<1x128xf32>
    %c3 = arith.constant 3 : index
    %c0_9 = arith.constant 0 : index
    %14 = vector.load %arg3[%c3, %c0_9] : memref<8x128xf32, #tpu.memory_space<vmem>>, vector<1x128xf32>
    %15 = arith.truncf %10 : vector<8x32xf32> to vector<8x32xbf16>
    %cst_10 = arith.constant dense<0.000000e+00> : vector<8x128xf32>
    %16 = tpu.matmul %15, %11, %cst_10 {dimension_numbers = #tpu.dot_dimension_numbers<[1], [0], [0], [1], [0, 0, 1, 1], [], []>} : vector<8x32xbf16>, vector<32x128xbf16>, vector<8x128xf32> -> vector<8x128xf32>
    %17 = vector.broadcast %12 : vector<1x128xf32> to vector<8x128xf32>
    %18 = arith.addf %16, %17 : vector<8x128xf32>
    %19 = vector.broadcast %2 : vector<8x1xf32> to vector<8x128xf32>
    %20 = vector.broadcast %13 : vector<1x128xf32> to vector<8x128xf32>
    %21 = arith.mulf %19, %20 : vector<8x128xf32>
    %22 = arith.addf %18, %21 : vector<8x128xf32>
    %23 = vector.broadcast %3 : vector<8x1xf32> to vector<8x128xf32>
    %24 = vector.broadcast %14 : vector<1x128xf32> to vector<8x128xf32>
    %25 = arith.mulf %23, %24 : vector<8x128xf32>
    %26 = arith.addf %22, %25 : vector<8x128xf32>
    %c0_11 = arith.constant 0 : index
    %c0_12 = arith.constant 0 : index
    %27 = vector.load %arg4[%c0_11, %c0_12] : memref<8x128xf32, #tpu.memory_space<vmem>>, vector<8x128xf32>
    tpu.vector_store %arg4[%c0_11, %c0_12], %26 {strides = array<i32>} : memref<8x128xf32, #tpu.memory_space<vmem>>, vector<8x128xf32>,
    return
  }
  func.func @transform_0(%arg0: i32) -> (i32, i32) {
    %c0_i32 = arith.constant 0 : i32
    %c0_i32_0 = arith.constant 0 : i32
    return %arg0, %c0_i32 : i32, i32
  }
  func.func @transform_1(%arg0: i32) -> (i32, i32) {
    %c0_i32 = arith.constant 0 : i32
    %c0_i32_0 = arith.constant 0 : i32
    %c0_i32_1 = arith.constant 0 : i32
    return %c0_i32, %c0_i32_0 : i32, i32
  }
  func.func @transform_2(%arg0: i32) -> (i32, i32) {
    %c0_i32 = arith.constant 0 : i32
    %c0_i32_0 = arith.constant 0 : i32
    %c0_i32_1 = arith.constant 0 : i32
    return %c0_i32, %c0_i32_0 : i32, i32
  }
  func.func @transform_3(%arg0: i32) -> (i32, i32) {
    %c0_i32 = arith.constant 0 : i32
    %c0_i32_0 = arith.constant 0 : i32
    return %arg0, %c0_i32 : i32, i32
  }
}

</mosaic_0001>

<llo_original>
// kernel: forward.1
$region0: #{forward.1}
  #allocation0 [shape = 'u32[]', space=smem, size = 0x4, offset = 0x4, fixed_abs, tag = 'smem constant byte address 0x4 - core index']
  #allocation1 [shape = 'u32[144,128]{1,0:T(1,128)}', space=vmem, size = 0x12000, scoped, tag = 'internal scratch']
  %s0 = inlined_call_operand.hbm [shape: f32[8,34], index: 0, kind: input, shape index: {}]
  %s1 = inlined_call_operand.hbm [shape: bf16[72,128], index: 1, kind: input, shape index: {}]
  %s2 = inlined_call_operand.hbm [shape: f32[8,128], index: 2, kind: input, shape index: {}]
  %s3 = inlined_call_operand.vmem [shape: f32[8,128], index: 3, kind: output, shape index: {}]
  %s4 = sld [smem:[#allocation0]]
  $region34: #{forward.1} parent=0
    _
  %s6 = ssub.s32 1, %s4
  %s7 = scalar_select 0, %s6, %s4
  $region1: #{forward.1} parent=0
    #allocation2 [shape = 'u8[4096]{0}', space=vmem, size = 0x1000, scoped, tag = 'input window, operand 0, single buffered']
    #allocation3 [shape = 's32[1]{0}', space=sflag, size = 0x4, scoped, tag = 'scoped memory for forward.1']
    #allocation4 [shape = 'u8[18432]{0}', space=vmem, size = 0x4800, scoped, tag = 'input window, operand 1, single buffered']
    #allocation5 [shape = 's32[1]{0}', space=sflag, size = 0x4, scoped, tag = 'scoped memory for forward.1']
    #allocation6 [shape = 'u8[4096]{0}', space=vmem, size = 0x1000, scoped, tag = 'input window, operand 2, single buffered']
    %8 = vsyncpa [#allocation3], 0
    %9 = vsyncpa [#allocation5], 0
    // Predicated region
    $region2: #{forward.1} parent=1 // pred_check
      _
    $region3: #{forward.1} parent=1 // pred_check_branch
      %11 = sbr.rel (0) target = $region5
    $region4: #{forward.1} parent=1 // pred_region
      %s13 = ssub.s32 128, 128
      %14 = vsyncadd [#allocation3], %s13
      %s16 = sshll.u32 [#allocation2], 4
      %s17 = int_to_ptr.vmem [resolvable:$true] %s16
      %19 = dma.hbm_to_vmem [thread:$0]  %s0, 128, %s17, [#allocation3]
    $region5: #{forward.1} parent=1 // pred_fallthru
      _
    // Predicated region
    $region6: #{forward.1} parent=1 // pred_check
      _
    $region7: #{forward.1} parent=1 // pred_check_branch
      %21 = sbr.rel (0) target = $region9
    $region8: #{forward.1} parent=1 // pred_region
      %s23 = ssub.s32 576, 576
      %24 = vsyncadd [#allocation5], %s23
      %s25 = sshll.u32 [#allocation4], 4
      %s26 = int_to_ptr.vmem [resolvable:$true] %s25
      %31 = dma.hbm_to_vmem [thread:$0]  %s1, 576, %s26, [#allocation5], 64, 64, 4
    $region9: #{forward.1} parent=1 // pred_fallthru
      _
    // Predicated region
    $region10: #{forward.1} parent=1 // pred_check
      _
    $region11: #{forward.1} parent=1 // pred_check_branch
      %33 = sbr.rel (0) target = $region13
    $region12: #{forward.1} parent=1 // pred_region
      %s35 = ssub.s32 128, 128
      %36 = vsyncadd [#allocation5], %s35
      %s38 = sshll.u32 [#allocation6], 4
      %s39 = int_to_ptr.vmem [resolvable:$true] %s38
      %41 = dma.hbm_to_vmem [thread:$0]  %s2, 128, %s39, [#allocation5]
    $region13: #{forward.1} parent=1 // pred_fallthru
      _
    // Predicated region
    $region14: #{forward.1} parent=1 // pred_check
      _
    $region15: #{forward.1} parent=1 // pred_check_branch
      %43 = sbr.rel (0) target = $region17
    $region16: #{forward.1} parent=1 // pred_region
      %44 = dma.done [#allocation3], 128
    $region17: #{forward.1} parent=1 // pred_fallthru
      _
    // Predicated region
    $region18: #{forward.1} parent=1 // pred_check
      _
    $region19: #{forward.1} parent=1 // pred_check_branch
      %46 = sbr.rel (0) target = $region21
    $region20: #{forward.1} parent=1 // pred_region
      %47 = dma.done [#allocation5], 576
    $region21: #{forward.1} parent=1 // pred_fallthru
      _
    // Predicated region
    $region22: #{forward.1} parent=1 // pred_check
      _
    $region23: #{forward.1} parent=1 // pred_check_branch
      %49 = sbr.rel (0) target = $region25
    $region24: #{forward.1} parent=1 // pred_region
      %50 = dma.done [#allocation5], 128
    $region25: #{forward.1} parent=1 // pred_fallthru
      _
    %v52 = vld [vmem:[#allocation2] sm:$0xff]
    %v53 = vpack.c.bf16 %v52, %v52
    %v54 = vld [vmem:[#allocation4] sm:$0xf]
    %v55 = vld [vmem:[#allocation4 + $0x4] sm:$0xf]
    %v56 = vld [vmem:[#allocation4 + $0x8] sm:$0xf]
    %v57 = vld [vmem:[#allocation4 + $0xc] sm:$0xf]
    %v58 = vld [vmem:[#allocation4 + $0x10] sm:$0x1]
    %v59 = vld [vmem:[#allocation6] sm:$0x1]
    %v60 = vlaneseq
    %v61 = vshrl.u32 %v60, 7
    %v62 = vsub.s32 0, %v61
    %v63 = vrot.slane %v59, %v62
    %v69 = vunpack.c.l.b16 %v54
    %v70 = vunpack.c.l.b16 %v55
    %v71 = vunpack.c.l.b16 %v56
    %v72 = vunpack.c.l.b16 %v57
    %v73 = vunpack.c.l.b16 %v58
    %v74 = vpack.c.b16 %v70, %v69
    %v75 = vpack.c.b16 %v72, %v71
    %v76 = vpack.c.b16 %v73, %v73
    %vm79 = vcmask 277504
    %v81 = vsel %vm79, %v53, 0
    %vm83 = vcmask 1040384
    %v85 = vsel %vm83, %v76, 0
    %87 = vmatprep.subr.bf16.mxu0 0
    %88 = vmatpush1.bf16.msra.mxu0 0
    %89 = vmatprep.subr.bf16.mxu0 0
    %90 = vmatpush1.bf16.msra.mxu0 0
    %91 = vmatprep.subr.bf16.mxu0 0
    %92 = vmatpush1.bf16.msra.mxu0 0
    %93 = vmatprep.subr.bf16.mxu0 0
    %94 = vmatpush1.bf16.msra.mxu0 0
    %95 = vmatprep.subr.bf16.mxu0 0
    %96 = vmatpush1.bf16.msra.mxu0 0
    %97 = vmatprep.subr.bf16.mxu0 0
    %98 = vmatpush1.bf16.msra.mxu0 %v85
    %99 = vmatprep.subr.bf16.mxu0 0
    %100 = vmatpush1.bf16.msra.mxu0 %v75
    %101 = vmatprep.subr.bf16.mxu0 0
    %102 = vmatpush1.bf16.msra.mxu0 %v74
    %103 = vmatprep.subr.bf16.mxu0 0
    %104 = vmatpush2.bf16.msra.mxu0 0
    %105 = vmatprep.subr.bf16.mxu0 0
    %106 = vmatpush2.bf16.msra.mxu0 0
    %107 = vmatprep.subr.bf16.mxu0 0
    %108 = vmatpush2.bf16.msra.mxu0 0
    %109 = vmatprep.subr.bf16.mxu0 0
    %110 = vmatpush2.bf16.msra.mxu0 0
    %111 = vmatprep.subr.bf16.mxu0 0
    %112 = vmatpush2.bf16.msra.mxu0 0
    %113 = vmatprep.subr.bf16.mxu0 0
    %114 = vmatpush2.bf16.msra.mxu0 0
    %115 = vmatprep.subr.bf16.mxu0 0
    %116 = vmatpush2.bf16.msra.mxu0 0
    %117 = vmatprep.subr.bf16.mxu0 0
    %118 = vmatpush2.bf16.msra.mxu0 0
    %119 = vmatprep.mubr.bf16.mxu0 0
    %120 = vmatmul.mubr.bf16.gmra.mxu0 %v81
    %v121 = vpop.f32.mrf.mxu0
    %v122 = vadd.f32 %v63, %v121
    %v123 = vpop.f32.mrf.mxu0
    %v124 = vpop.f32.mrf.mxu0
    %v125 = vpop.f32.mrf.mxu0
    %126 = vdwg.mxu0
    %v127 = vmax.f32 %v122, 0.0
    %v128 = vld [vmem:[#allocation4 + $0x14] sm:$0xf]
    %v129 = vld [vmem:[#allocation4 + $0x18] sm:$0xf]
    %v130 = vld [vmem:[#allocation4 + $0x1c] sm:$0xf]
    %v131 = vld [vmem:[#allocation4 + $0x20] sm:$0xf]
    %v132 = vld [vmem:[#allocation6 + $0x1] sm:$0x1]
    %v133 = vld [vmem:[#allocation6 + $0x2] sm:$0x1]
    %v134 = vld [vmem:[#allocation6 + $0x3] sm:$0x1]
    %v135 = vpack.c.bf16 %v127, %v127
    %v136 = vlaneseq
    %v137 = vshrl.u32 %v136, 7
    %v138 = vsub.s32 0, %v137
    %v139 = vrot.slane %v132, %v138
    %v144 = vunpack.c.l.b16 %v128
    %v145 = vunpack.c.l.b16 %v129
    %v146 = vunpack.c.l.b16 %v130
    %v147 = vunpack.c.l.b16 %v131
    %v148 = vpack.c.b16 %v145, %v144
    %v149 = vpack.c.b16 %v147, %v146
    %vm152 = vcmask 261120
    %v154 = vsel %vm152, %v135, 0
    %156 = vmatprep.subr.bf16.mxu0 0
    %157 = vmatpush1.bf16.msra.mxu0 0
    %158 = vmatprep.subr.bf16.mxu0 0
    %159 = vmatpush1.bf16.msra.mxu0 0
    %160 = vmatprep.subr.bf16.mxu0 0
    %161 = vmatpush1.bf16.msra.mxu0 0
    %162 = vmatprep.subr.bf16.mxu0 0
    %163 = vmatpush1.bf16.msra.mxu0 0
    %164 = vmatprep.subr.bf16.mxu0 0
    %165 = vmatpush1.bf16.msra.mxu0 0
    %166 = vmatprep.subr.bf16.mxu0 0
    %167 = vmatpush1.bf16.msra.mxu0 0
    %168 = vmatprep.subr.bf16.mxu0 0
    %169 = vmatpush1.bf16.msra.mxu0 %v149
    %170 = vmatprep.subr.bf16.mxu0 0
    %171 = vmatpush1.bf16.msra.mxu0 %v148
    %172 = vmatprep.subr.bf16.mxu0 0
    %173 = vmatpush2.bf16.msra.mxu0 0
    %174 = vmatprep.subr.bf16.mxu0 0
    %175 = vmatpush2.bf16.msra.mxu0 0
    %176 = vmatprep.subr.bf16.mxu0 0
    %177 = vmatpush2.bf16.msra.mxu0 0
    %178 = vmatprep.subr.bf16.mxu0 0
    %179 = vmatpush2.bf16.msra.mxu0 0
    %180 = vmatprep.subr.bf16.mxu0 0
    %181 = vmatpush2.bf16.msra.mxu0 0
    %182 = vmatprep.subr.bf16.mxu0 0
    %183 = vmatpush2.bf16.msra.mxu0 0
    %184 = vmatprep.subr.bf16.mxu0 0
    %185 = vmatpush2.bf16.msra.mxu0 0
    %186 = vmatprep.subr.bf16.mxu0 0
    %187 = vmatpush2.bf16.msra.mxu0 0
    %188 = vmatprep.mubr.bf16.mxu0 0
    %189 = vmatmul.mubr.bf16.gmra.mxu0 %v154
    %v190 = vpop.f32.mrf.mxu0
    %v191 = vadd.f32 %v139, %v190
    %v192 = vpop.f32.mrf.mxu0
    %v193 = vpop.f32.mrf.mxu0
    %v194 = vpop.f32.mrf.mxu0
    %195 = vdwg.mxu0
    %197 = vset.pattern.permute.xlu0 32
    %198 = vperm.xlu0 %197, %v52
    %v199 = vpop.permute.xlu0 %198
    %v201 = vlaneseq
    %v202 = vshrl.u32 %v201, 7
    %v203 = vsub.s32 0, %v202
    %v204 = vrot.slane %v133, %v203
    %v205 = vmul.f32 %v199, %v204
    %v206 = vadd.f32 %v191, %v205
    %207 = vset.pattern.permute.xlu0 33
    %208 = vperm.xlu0 %207, %v52
    %v209 = vpop.permute.xlu0 %208
    %v211 = vlaneseq
    %v212 = vshrl.u32 %v211, 7
    %v213 = vsub.s32 0, %v212
    %v214 = vrot.slane %v134, %v213
    %v215 = vmul.f32 %v209, %v214
    %v216 = vadd.f32 %v206, %v215
    %217 = vst [vmem:[%s3] sm:$0xff] %v216
    // Predicated region
    $region26: #{forward.1} parent=1 // pred_check
      _
    $region27: #{forward.1} parent=1 // pred_check_branch
      %219 = sbr.rel (0) target = $region29
    $region28: #{forward.1} parent=1 // pred_region
      _
    $region29: #{forward.1} parent=1 // pred_fallthru
      _
    // Predicated region
    $region30: #{forward.1} parent=1 // pred_check
      _
    $region31: #{forward.1} parent=1 // pred_check_branch
      %221 = sbr.rel (0) target = $region33
    $region32: #{forward.1} parent=1 // pred_region
      _
    $region33: #{forward.1} parent=1 // pred_fallthru
      _
    %222 = vsyncpa [#allocation3], 1
    %223 = vsyncpa [#allocation5], 1

</llo_original>
